<compile_context>
chip_gen: v7x
topology: tpu7x:2x2x1
jax: 0.10.0
libtpu: 0.0.40
codegen_flags: <defaults>
</compile_context>

<pallas_src>
import functools

import jax
import jax.numpy as jnp
from jax.experimental import pallas as pl
from jax.experimental.pallas import tpu as pltpu


# --------------------------------------------------------------------------
# small helpers
# --------------------------------------------------------------------------
def _round_up(x, m):
    return (x + m - 1) // m * m


def _out_size(H, W, K, stride, padding, dilation):
    Ho = (H + 2 * padding - (dilation * (K - 1) + 1)) // stride + 1
    Wo = (W + 2 * padding - (dilation * (K - 1) + 1)) // stride + 1
    return Ho, Wo


def _vmem_capacity_bytes():
    try:
        return int(pltpu.get_tpu_info().vmem_capacity_bytes)
    except Exception:
        return 64 * 1024 * 1024            # conservative (v7x-sized) fallback


def _is_pre_v6_tpu():
    # v5e and older have no bf16 VPU -> keep the modulation multiply in f32 there.
    try:
        kind = jax.devices()[0].device_kind.lower()
        return any(t in kind for t in ("v2", "v3", "v4", "v5"))
    except Exception:
        return False


def _plan_tiling(N, ckk, P, itemsize):
    """Pick (pt, P_pad, vmem_limit).  Full-CKK contraction: shrink the lane tile
    to fit the cols budget instead of splitting the channel group (which would
    fragment the MXU contraction into misaligned passes)."""
    cap = _vmem_capacity_bytes()
    if cap >= 96 * 1024 * 1024:            # v5e / v6e: 128 MiB physical VMEM
        pt_max, cols_budget, vmem_limit = 2048, 10 * 1024 * 1024, 96 * 1024 * 1024
    else:                                  # v7x: 64 MiB physical VMEM, 2 TCs
        pt_max, cols_budget, vmem_limit = 1024, 5 * 1024 * 1024, 44 * 1024 * 1024

    pt = min(pt_max, _round_up(P, 128))
    while pt > 128 and ckk * pt * itemsize > cols_budget:
        pt = _round_up(pt // 2, 128)
    # keep at least 2 parallel grid blocks so both v7x TensorCores get work
    if N * ((P + pt - 1) // pt) < 2 and pt > 128:
        pt = _round_up(pt // 2, 128)
    P_pad = _round_up(P, pt)
    return pt, P_pad, vmem_limit


# --------------------------------------------------------------------------
# Pallas kernel: modulated deformable contraction (single full-CKK matmul)
# --------------------------------------------------------------------------
def _deform_conv_kernel(w_ref, e_ref, c_ref, m_ref, o_ref, *, mod_f32):
    # w_ref: (C_out_pad, CKK) bf16  -- full weight, VMEM-resident (constant index)
    # e_ref: (CKK, KK) f32          -- one-hot expansion (row r -> mask row r % KK)
    # c_ref: (CKK, Pt) bf16         -- bilinear-sampled columns for this (b, p) tile
    # m_ref: (KK, Pt) f32           -- mask logits for this tile
    # o_ref: (C_out_pad, Pt) bf16
    # sigmoid only on (KK, Pt); broadcast over channels in-register with a tiny
    # one-hot matmul -- no C_in-times mask ever touches HBM.
    mask = jax.nn.sigmoid(m_ref[...].astype(jnp.float32))                      # (KK, Pt)
    mask_full = jnp.dot(e_ref[...], mask, preferred_element_type=jnp.float32)  # (CKK, Pt)
    if mod_f32:
        # pre-v6 path: no bf16 VPU -> modulate in f32, cast once for the MXU.
        cols = (c_ref[...].astype(jnp.float32) * mask_full).astype(jnp.bfloat16)
    else:
        # v6e / v7x: bf16 VPU -> single bf16 multiply, no up/down-cast stream.
        cols = c_ref[...] * mask_full.astype(jnp.bfloat16)
    o_ref[...] = jnp.dot(w_ref[...], cols,
                         preferred_element_type=jnp.float32).astype(o_ref.dtype)


def _modulated_deform_matmul(conv_weight, cols, mask_logits, out_channels, pt, vmem_limit):
    # conv_weight: (C_out, C_in, K, K) f32
    # cols:        (N, C_in*KK, P_pad) bf16, row order c*KK + k
    # mask_logits: (N, KK, P_pad) f32
    N, CKK, P_pad = cols.shape
    KK = conv_weight.shape[2] * conv_weight.shape[3]
    C_out = out_channels
    C_out_pad = _round_up(C_out, 8)
    n_p = P_pad // pt

    # weight as a single MXU-ready (C_out_pad, CKK) bf16 block, VMEM-resident.
    w2 = conv_weight.reshape(C_out, CKK).astype(jnp.float32)
    if C_out_pad != C_out:
        w2 = jnp.pad(w2, ((0, C_out_pad - C_out), (0, 0)))
    w2 = w2.astype(jnp.bfloat16)

    # one-hot expansion matrix: row r of a cols block uses mask row r % KK.
    rows = jnp.arange(CKK, dtype=jnp.int32) % KK
    expand = (rows[:, None] == jnp.arange(KK, dtype=jnp.int32)[None, :]).astype(jnp.float32)

    kernel = functools.partial(_deform_conv_kernel, mod_f32=_is_pre_v6_tpu())

    out = pl.pallas_call(
        kernel,
        out_shape=jax.ShapeDtypeStruct((N, C_out_pad, P_pad), jnp.bfloat16),
        grid_spec=pltpu.PrefetchScalarGridSpec(
            num_scalar_prefetch=0,
            grid=(N, n_p),
            in_specs=[
                # full weight, constant index -> fetched once, stays in VMEM
                pl.BlockSpec((C_out_pad, CKK), lambda b, p: (0, 0)),
                # mask expansion matrix, constant
                pl.BlockSpec((CKK, KK), lambda b, p: (0, 0)),
                # columns: batch squeezed, full CKK, lane-dense P tile
                pl.BlockSpec((None, CKK, pt), lambda b, p: (b, 0, p)),
                # mask logits for the same P tile
                pl.BlockSpec((None, KK, pt), lambda b, p: (b, 0, p)),
            ],
            out_specs=pl.BlockSpec((None, C_out_pad, pt), lambda b, p: (b, 0, p)),
        ),
        compiler_params=pltpu.CompilerParams(
            dimension_semantics=("parallel", "parallel"),
            vmem_limit_bytes=vmem_limit,
        ),
    )(w2, expand, cols, mask_logits)
    return out


# --------------------------------------------------------------------------
# plain-JAX glue: deformable bilinear im2col
# --------------------------------------------------------------------------
def _deform_im2col(x, offset, K, stride, padding, dilation, out_dtype=jnp.bfloat16):
    # TODO(synk): the data-dependent bilinear gather has no clean Pallas TPU
    # equivalent (per-output-pixel dynamic indices); it stays in plain JAX and
    # only the modulated contraction runs inside the Pallas kernel.
    N, C, H, W = x.shape
    KK = K * K
    Ho, Wo = _out_size(H, W, K, stride, padding, dilation)
    P = Ho * Wo
    KP = KK * P

    # offset channel layout (deformable_groups=1): 2k -> dy, 2k+1 -> dx
    dy = offset[:, 0::2].reshape(N, KK, P).astype(jnp.float32)
    dx = offset[:, 1::2].reshape(N, KK, P).astype(jnp.float32)

    ki = (jnp.arange(KK) // K).astype(jnp.float32)
    kj = (jnp.arange(KK) % K).astype(jnp.float32)
    ho = jnp.arange(Ho, dtype=jnp.float32)
    wo = jnp.arange(Wo, dtype=jnp.float32)
    base_h = jnp.broadcast_to((ho * stride - padding)[:, None], (Ho, Wo)).reshape(P)
    base_w = jnp.broadcast_to((wo * stride - padding)[None, :], (Ho, Wo)).reshape(P)

    h_im = base_h[None, None, :] + ki[None, :, None] * dilation + dy  # (N, KK, P)
    w_im = base_w[None, None, :] + kj[None, :, None] * dilation + dx  # (N, KK, P)

    valid = (h_im > -1.0) & (w_im > -1.0) & (h_im < H) & (w_im < W)

    h_low = jnp.floor(h_im)
    w_low = jnp.floor(w_im)
    lh = h_im - h_low
    lw = w_im - w_low
    hh = 1.0 - lh
    hw = 1.0 - lw

    # channels-minor view: each gathered index pulls a contiguous length-C row,
    # so the index tensor is (N, KK*P) -- never replicated C times.
    x_rows = x.astype(jnp.float32).transpose(0, 2, 3, 1).reshape(N, H * W, C)
    gather = jax.vmap(lambda rows, idx: jnp.take(rows, idx, axis=0))

    def corner(hc, wc, wgt):
        in_bounds = (hc >= 0) & (hc <= H - 1) & (wc >= 0) & (wc <= W - 1)
        wgt = jnp.where(valid & in_bounds, wgt, 0.0).reshape(N, KP)
        hci = jnp.clip(hc, 0, H - 1).astype(jnp.int32)
        wci = jnp.clip(wc, 0, W - 1).astype(jnp.int32)
        idx = (hci * W + wci).reshape(N, KP)          # (N, KK*P)
        g = gather(x_rows, idx)                       # (N, KK*P, C)
        return g * wgt[:, :, None]

    # accumulate the 4 corners before anything is cast / laid out for the kernel
    cols = (
        corner(h_low, w_low, hh * hw)
        + corner(h_low, w_low + 1.0, hh * lw)
        + corner(h_low + 1.0, w_low, lh * hw)
        + corner(h_low + 1.0, w_low + 1.0, lh * lw)
    ).astype(out_dtype)                               # (N, KK*P, C)

    # (N, KK, P, C) -> (N, C, KK, P) -> (N, C*KK, P): row order c*KK + k matches
    # weight.reshape(C_out, C_in*K*K).
    cols = cols.reshape(N, KK, P, C).transpose(0, 3, 1, 2).reshape(N, C * KK, P)
    return cols, (Ho, Wo)


# --------------------------------------------------------------------------
# DFConv2d module (modulated DCN, deformable_groups=1, groups=1, bias=False)
# --------------------------------------------------------------------------
class DFConv2dPallas:
    def __init__(self, in_channels, out_channels, key, with_modulated_dcn=True,
                 kernel_size=3, stride=1, dilation=1, deformable_groups=1):
        assert with_modulated_dcn and deformable_groups == 1
        self.in_channels = in_channels
        self.out_channels = out_channels
        self.kernel_size = kernel_size
        self.stride = stride
        self.dilation = dilation
        self.padding = dilation * (kernel_size - 1) // 2

        offset_base = kernel_size * kernel_size
        offset_channels = offset_base * 3  # 2*KK offsets + KK mask
        self.offset_split = offset_base * deformable_groups * 2

        k1, k2 = jax.random.split(key)
        fan_in = in_channels * kernel_size * kernel_size
        bound_off = (3.0 / fan_in) ** 0.5  # kaiming_uniform_(a=1)
        self.offset_weight = jax.random.uniform(
            k1,
            (deformable_groups * offset_channels, in_channels, kernel_size, kernel_size),
            minval=-bound_off, maxval=bound_off, dtype=jnp.float32)
        self.offset_bias = jnp.zeros((deformable_groups * offset_channels,), jnp.float32)
        stdv = 1.0 / (fan_in ** 0.5)       # ModulatedDeformConv.reset_parameters()
        self.conv_weight = jax.random.uniform(
            k2, (out_channels, in_channels, kernel_size, kernel_size),
            minval=-stdv, maxval=stdv, dtype=jnp.float32)

    def _offset_conv(self, x):
        # Standard dense conv -> XLA native conv (avoids a 9x im2col HBM round
        # trip that would only feed a 27-row, MXU-starved matmul).
        return jax.lax.conv_general_dilated(
            x.astype(jnp.float32), self.offset_weight,
            window_strides=(self.stride, self.stride),
            padding=((self.padding, self.padding), (self.padding, self.padding)),
            rhs_dilation=(self.dilation, self.dilation),
            dimension_numbers=("NCHW", "OIHW", "NCHW"),
        ) + self.offset_bias[None, :, None, None]

    def __call__(self, x):
        N, C, H, W = x.shape
        K = self.kernel_size
        KK = K * K

        offset_mask = self._offset_conv(x)                 # (N, 3*KK, Ho, Wo)
        Ho, Wo = offset_mask.shape[2], offset_mask.shape[3]
        P = Ho * Wo

        offset = offset_mask[:, : self.offset_split]                         # (N, 2KK, Ho, Wo)
        mask_logits = offset_mask[:, self.offset_split:].reshape(N, KK, P)   # (N, KK, P)

        # deformable bilinear sampling (JAX glue), bf16 columns, row order c*KK+k
        cols, _ = _deform_im2col(x, offset, K, self.stride, self.padding, self.dilation)

        # pick the lane tile first, then pad P up to a multiple of it
        pt, P_pad, vmem_limit = _plan_tiling(N, C * KK, P, cols.dtype.itemsize)
        if P_pad != P:
            cols = jnp.pad(cols, ((0, 0), (0, 0), (0, P_pad - P)))
            mask_logits = jnp.pad(mask_logits, ((0, 0), (0, 0), (0, P_pad - P)))

        out = _modulated_deform_matmul(self.conv_weight, cols, mask_logits,
                                       self.out_channels, pt, vmem_limit)
        # drop C_out / P padding before the NCHW reshape
        out = out[:, : self.out_channels, :P].reshape(N, self.out_channels, Ho, Wo)
        return out.astype(x.dtype)


# --------------------------------------------------------------------------
# pure-JAX reference (f32, mask broadcast) for a correctness check
# --------------------------------------------------------------------------
def _reference_forward(module, x):
    N, C, H, W = x.shape
    K = module.kernel_size
    KK = K * K
    offset_mask = module._offset_conv(x)
    Ho, Wo = offset_mask.shape[2], offset_mask.shape[3]
    P = Ho * Wo
    offset = offset_mask[:, : module.offset_split]
    mask = jax.nn.sigmoid(offset_mask[:, module.offset_split:].reshape(N, KK, P))
    cols, _ = _deform_im2col(x, offset, K, module.stride, module.padding,
                             module.dilation, out_dtype=jnp.float32)
    mask_b = jnp.broadcast_to(mask[:, None, :, :], (N, C, KK, P)).reshape(N, C * KK, P)
    w2 = module.conv_weight.reshape(module.out_channels, -1)
    out = jnp.einsum("ok,nkp->nop", w2, cols * mask_b)
    return out.reshape(N, module.out_channels, Ho, Wo)


if __name__ == "__main__":
    key = jax.random.PRNGKey(0)
    kx, kp = jax.random.split(key)

    N, C_in, H, W = 2, 4, 16, 16
    C_out = 8

    x = jax.random.normal(kx, (N, C_in, H, W), dtype=jnp.float32)
    module = DFConv2dPallas(C_in, C_out, kp, with_modulated_dcn=True, kernel_size=3)

    fwd = jax.jit(module.__call__)
    y = fwd(x)
    jax.block_until_ready(y)

    assert y.shape == (N, C_out, H, W), y.shape
    assert bool(jnp.all(jnp.isfinite(y)))

    # numerical check vs. f32 reference (tolerance for bf16 MXU operands / output)
    y_ref = _reference_forward(module, x)
    assert bool(jnp.allclose(y.astype(jnp.float32), y_ref, rtol=5e-2, atol=5e-2)), float(
        jnp.max(jnp.abs(y.astype(jnp.float32) - y_ref)))

    print("KERNEL_OK")
</pallas_src>

<mosaic_0001>
module attributes {stable_mosaic.version = 11 : i64} {
  func.func @_deform_conv_kernel(%arg0: i32, %arg1: i32, %arg2: memref<8x36xbf16, #tpu.memory_space<vmem>>, %arg3: memref<36x9xf32, #tpu.memory_space<vmem>>, %arg4: memref<1x36x256xbf16, #tpu.memory_space<vmem>>, %arg5: memref<1x9x256xf32, #tpu.memory_space<vmem>>, %arg6: memref<1x8x256xbf16, #tpu.memory_space<vmem>>) attributes {dimension_semantics = [#tpu.dimension_semantics<parallel>, #tpu.dimension_semantics<parallel>], iteration_bounds = array<i64: 2, 1>, scalar_prefetch = 0 : i64, scratch_operands = 0 : i64, tpu.core_type = #tpu.core_type<tc>, window_params = [{pipeline_mode = #tpu.pipeline_mode<synchronous>, transform_indices = @transform_0, window_bounds = array<i64: 8, 36>}, {pipeline_mode = #tpu.pipeline_mode<synchronous>, transform_indices = @transform_1, window_bounds = array<i64: 36, 9>}, {transform_indices = @transform_2, window_bounds = array<i64: 1, 36, 256>}, {transform_indices = @transform_3, window_bounds = array<i64: 1, 9, 256>}, {transform_indices = @transform_4, window_bounds = array<i64: 1, 8, 256>}]} {
    %c0 = arith.constant 0 : index
    %c0_0 = arith.constant 0 : index
    %c0_1 = arith.constant 0 : index
    %0 = vector.load %arg5[%c0, %c0_0, %c0_1] : memref<1x9x256xf32, #tpu.memory_space<vmem>>, vector<1x9x256xf32>
    %1 = vector.shape_cast %0 : vector<1x9x256xf32> to vector<9x256xf32>
    %2 = arith.negf %1 : vector<9x256xf32>
    %3 = math.exp %2 : vector<9x256xf32>
    %cst = arith.constant 1.000000e+00 : f32
    %4 = vector.broadcast %cst : f32 to vector<9x256xf32>
    %5 = arith.addf %4, %3 : vector<9x256xf32>
    %6 = arith.divf %4, %5 : vector<9x256xf32>
    %c0_2 = arith.constant 0 : index
    %c0_3 = arith.constant 0 : index
    %7 = vector.load %arg3[%c0_2, %c0_3] : memref<36x9xf32, #tpu.memory_space<vmem>>, vector<36x9xf32>
    %cst_4 = arith.constant dense<0.000000e+00> : vector<36x256xf32>
    %8 = tpu.matmul %7, %6, %cst_4 {dimension_numbers = #tpu.dot_dimension_numbers<[1], [0], [0], [1], [0, 0, 1, 1], [], []>} : vector<36x9xf32>, vector<9x256xf32>, vector<36x256xf32> -> vector<36x256xf32>
    %c0_5 = arith.constant 0 : index
    %c0_6 = arith.constant 0 : index
    %c0_7 = arith.constant 0 : index
    %9 = vector.load %arg4[%c0_5, %c0_6, %c0_7] : memref<1x36x256xbf16, #tpu.memory_space<vmem>>, vector<1x36x256xbf16>
    %10 = vector.shape_cast %9 : vector<1x36x256xbf16> to vector<36x256xbf16>
    %11 = arith.truncf %8 : vector<36x256xf32> to vector<36x256xbf16>
    %12 = arith.mulf %10, %11 : vector<36x256xbf16>
    %c0_8 = arith.constant 0 : index
    %c0_9 = arith.constant 0 : index
    %13 = vector.load %arg2[%c0_8, %c0_9] : memref<8x36xbf16, #tpu.memory_space<vmem>>, vector<8x36xbf16>
    %cst_10 = arith.constant dense<0.000000e+00> : vector<8x256xf32>
    %14 = tpu.matmul %13, %12, %cst_10 {dimension_numbers = #tpu.dot_dimension_numbers<[1], [0], [0], [1], [0, 0, 1, 1], [], []>} : vector<8x36xbf16>, vector<36x256xbf16>, vector<8x256xf32> -> vector<8x256xf32>
    %15 = arith.truncf %14 : vector<8x256xf32> to vector<8x256xbf16>
    %c0_11 = arith.constant 0 : index
    %c0_12 = arith.constant 0 : index
    %c0_13 = arith.constant 0 : index
    %16 = vector.load %arg6[%c0_11, %c0_12, %c0_13] : memref<1x8x256xbf16, #tpu.memory_space<vmem>>, vector<1x8x256xbf16>
    %17 = vector.shape_cast %16 : vector<1x8x256xbf16> to vector<8x256xbf16>
    %18 = vector.shape_cast %15 : vector<8x256xbf16> to vector<1x8x256xbf16>
    tpu.vector_store %arg6[%c0_11, %c0_12, %c0_13], %18 {strides = array<i32>} : memref<1x8x256xbf16, #tpu.memory_space<vmem>>, vector<1x8x256xbf16>,
    return
  }
  func.func @transform_0(%arg0: i32, %arg1: i32) -> (i32, i32) {
    %c0_i32 = arith.constant 0 : i32
    %c0_i32_0 = arith.constant 0 : i32
    %c0_i32_1 = arith.constant 0 : i32
    return %c0_i32, %c0_i32_0 : i32, i32
  }
  func.func @transform_1(%arg0: i32, %arg1: i32) -> (i32, i32) {
    %c0_i32 = arith.constant 0 : i32
    %c0_i32_0 = arith.constant 0 : i32
    %c0_i32_1 = arith.constant 0 : i32
    return %c0_i32, %c0_i32_0 : i32, i32
  }
  func.func @transform_2(%arg0: i32, %arg1: i32) -> (i32, i32, i32) {
    %c0_i32 = arith.constant 0 : i32
    %c0_i32_0 = arith.constant 0 : i32
    return %arg0, %c0_i32, %arg1 : i32, i32, i32
  }
  func.func @transform_3(%arg0: i32, %arg1: i32) -> (i32, i32, i32) {
    %c0_i32 = arith.constant 0 : i32
    %c0_i32_0 = arith.constant 0 : i32
    return %arg0, %c0_i32, %arg1 : i32, i32, i32
  }
  func.func @transform_4(%arg0: i32, %arg1: i32) -> (i32, i32, i32) {
    %c0_i32 = arith.constant 0 : i32
    %c0_i32_0 = arith.constant 0 : i32
    return %arg0, %c0_i32, %arg1 : i32, i32, i32
  }
}

</mosaic_0001>

<llo_original>
// kernel: a_call__.1
$region0: #{a_call__.1}
  #allocation0 [shape = 'u32[]', space=smem, size = 0x4, offset = 0x4, fixed_abs, tag = 'smem constant byte address 0x4 - core index']
  #allocation1 [shape = 'u32[144,128]{1,0:T(1,128)}', space=vmem, size = 0x12000, scoped, tag = 'internal scratch']
  %s0 = inlined_call_operand.vmem [shape: bf16[8,36], index: 0, kind: input, shape index: {}]
  %s1 = inlined_call_operand.vmem [shape: f32[36,9], index: 1, kind: input, shape index: {}]
  %s2 = inlined_call_operand.vmem [shape: bf16[2,36,256], index: 2, kind: input, shape index: {}]
  %s3 = inlined_call_operand.vmem [shape: f32[2,9,256], index: 3, kind: input, shape index: {}]
  %s4 = inlined_call_operand.vmem [shape: bf16[2,8,256], index: 4, kind: output, shape index: {}]
  %s5 = sld [smem:[#allocation0]]
  $region49: #{a_call__.1} parent=0
    _
  %s7 = ssub.s32 1, %s5
  %s8 = scalar_select 0, %s7, %s5
  loop: start=0, step=1, limit=4
  $region2: #{a_call__.1} parent=0 // loop_pre_header
    _
  $region3: #{a_call__.1} parent=0 // loop_header
    %s10 = sphi 0, %s14
    %p11 = scmp.ge.s32.totalorder %s10, 4
    %s17 = sphi 0, %s29
    %s18 = sphi 0, %s25
    %s19 = sphi 0, %s17
    %s20 = sphi 0, %s18
    %s21 = sphi 0, %s19
    %s22 = sphi 0, %s20
    %s30 = sphi 0, %s30
    %s32 = sphi 0, %s30
    %s33 = sphi 0, %s32
    %s47 = sphi 0, %s33
    %s51 = sphi 0, %s51
    %s53 = sphi 0, %s51
    %s54 = sphi 0, %s53
    %s68 = sphi 0, %s54
    %s76 = sphi 0, %s78
    %s79 = sphi 0, %s76
    %s80 = sphi 0, %s79
    %s96 = sphi 0, %s80
    %s104 = sphi 0, %s106
    %s107 = sphi 0, %s104
    %s108 = sphi 0, %s107
    %s124 = sphi 0, %s108
    %s132 = sphi 0, %s134
    %s135 = sphi 0, %s132
    %s136 = sphi 0, %s135
    %s152 = sphi 0, %s136
  $region4: #{a_call__.1} parent=0 // loop_header_branch
    %13 = sbr.rel (%p11) target = $region8
  $region5: #{a_call__.1} parent=0 // loop_body
    %s15 = ssub.s32 %s10, 1
    %s16 = ssub.s32 %s10, 2
    %s23 = sadd.s32 1, %s18
    %p24 = scmp.ge.s32.totalorder %s23, 1
    %s25 = scalar_select %p24, 0, %s23
    %s26 = sadd.s32 1, %s17
    %s27 = scalar_select %p24, %s26, %s17
    %p28 = scmp.ge.s32.totalorder %s27, 2
    %s29 = scalar_select %p28, 0, %s27
    %s31 = sadd.s32 %s30, 1
    %p34 = scmp.eq.s32.totalorder %s10, 1
    %p35 = scmp.ne.s32.totalorder %s30, %s32
    %p36 = scmp.eq.s32.totalorder %s10, 0
    %p37 = por %p35, %p36
    %p38 = scmp.ne.s32.totalorder %s30, %s32
    %p39 = scmp.eq.s32.totalorder %s15, 1
    %p40 = por %p38, %p39
    %p41 = scmp.ne.s32.totalorder %s32, %s33
    %p42 = scmp.eq.s32.totalorder %s15, 0
    %p43 = por %p41, %p42
    %p44 = scmp.ne.s32.totalorder %s32, %s33
    %p45 = scmp.eq.s32.totalorder %s16, 1
    %p46 = por %p44, %p45
    %p48 = scmp.ne.s32.totalorder %s33, %s47
    %p49 = scmp.eq.s32.totalorder %s16, 0
    %p50 = por %p48, %p49
    %s52 = sadd.s32 %s51, 1
    %p55 = scmp.eq.s32.totalorder %s10, 1
    %p56 = scmp.ne.s32.totalorder %s51, %s53
    %p57 = scmp.eq.s32.totalorder %s10, 0
    %p58 = por %p56, %p57
    %p59 = scmp.ne.s32.totalorder %s51, %s53
    %p60 = scmp.eq.s32.totalorder %s15, 1
    %p61 = por %p59, %p60
    %p62 = scmp.ne.s32.totalorder %s53, %s54
    %p63 = scmp.eq.s32.totalorder %s15, 0
    %p64 = por %p62, %p63
    %p65 = scmp.ne.s32.totalorder %s53, %s54
    %p66 = scmp.eq.s32.totalorder %s16, 1
    %p67 = por %p65, %p66
    %p69 = scmp.ne.s32.totalorder %s54, %s68
    %p70 = scmp.eq.s32.totalorder %s16, 0
    %p71 = por %p69, %p70
    %s72 = ssub.s32 %s17, %s29
    %s73 = ssub.s32 %s18, %s25
    %s74 = sor.u32 %s72, %s73
    %p75 = scmp.eq.s32.totalorder %s74, 0
    %s77 = sadd.s32 %s76, 1
    %s78 = scalar_select %p75, %s76, %s77
    %p81 = pneg %p75
    %p82 = scmp.eq.s32.totalorder %s10, 1
    %p83 = por %p81, %p82
    %p84 = scmp.ne.s32.totalorder %s76, %s79
    %p85 = scmp.eq.s32.totalorder %s10, 0
    %p86 = por %p84, %p85
    %p87 = scmp.ne.s32.totalorder %s76, %s79
    %p88 = scmp.eq.s32.totalorder %s15, 1
    %p89 = por %p87, %p88
    %p90 = scmp.ne.s32.totalorder %s79, %s80
    %p91 = scmp.eq.s32.totalorder %s15, 0
    %p92 = por %p90, %p91
    %p93 = scmp.ne.s32.totalorder %s79, %s80
    %p94 = scmp.eq.s32.totalorder %s16, 1
    %p95 = por %p93, %p94
    %p97 = scmp.ne.s32.totalorder %s80, %s96
    %p98 = scmp.eq.s32.totalorder %s16, 0
    %p99 = por %p97, %p98
    %s100 = ssub.s32 %s17, %s29
    %s101 = ssub.s32 %s18, %s25
    %s102 = sor.u32 %s100, %s101
    %p103 = scmp.eq.s32.totalorder %s102, 0
    %s105 = sadd.s32 %s104, 1
    %s106 = scalar_select %p103, %s104, %s105
    %p109 = pneg %p103
    %p110 = scmp.eq.s32.totalorder %s10, 1
    %p111 = por %p109, %p110
    %p112 = scmp.ne.s32.totalorder %s104, %s107
    %p113 = scmp.eq.s32.totalorder %s10, 0
    %p114 = por %p112, %p113
    %p115 = scmp.ne.s32.totalorder %s104, %s107
    %p116 = scmp.eq.s32.totalorder %s15, 1
    %p117 = por %p115, %p116
    %p118 = scmp.ne.s32.totalorder %s107, %s108
    %p119 = scmp.eq.s32.totalorder %s15, 0
    %p120 = por %p118, %p119
    %p121 = scmp.ne.s32.totalorder %s107, %s108
    %p122 = scmp.eq.s32.totalorder %s16, 1
    %p123 = por %p121, %p122
    %p125 = scmp.ne.s32.totalorder %s108, %s124
    %p126 = scmp.eq.s32.totalorder %s16, 0
    %p127 = por %p125, %p126
    %s128 = ssub.s32 %s17, %s29
    %s129 = ssub.s32 %s18, %s25
    %s130 = sor.u32 %s128, %s129
    %p131 = scmp.eq.s32.totalorder %s130, 0
    %s133 = sadd.s32 %s132, 1
    %s134 = scalar_select %p131, %s132, %s133
    %p137 = pneg %p131
    %p138 = scmp.eq.s32.totalorder %s10, 1
    %p139 = por %p137, %p138
    %p140 = scmp.ne.s32.totalorder %s132, %s135
    %p141 = scmp.eq.s32.totalorder %s10, 0
    %p142 = por %p140, %p141
    %p143 = scmp.ne.s32.totalorder %s132, %s135
    %p144 = scmp.eq.s32.totalorder %s15, 1
    %p145 = por %p143, %p144
    %p146 = scmp.ne.s32.totalorder %s135, %s136
    %p147 = scmp.eq.s32.totalorder %s15, 0
    %p148 = por %p146, %p147
    %p149 = scmp.ne.s32.totalorder %s135, %s136
    %p150 = scmp.eq.s32.totalorder %s16, 1
    %p151 = por %p149, %p150
    %p153 = scmp.ne.s32.totalorder %s136, %s152
    %p154 = scmp.eq.s32.totalorder %s16, 0
    %p155 = por %p153, %p154
    %p156 = scmp.le.s32.totalorder 1, %s10
    %p157 = scmp.lt.s32.totalorder %s10, 3
    %p158 = pnand %p156, %p157
    %p159 = pneg %p158
    // Predicated region
    $region9: #{a_call__.1} parent=5 // pred_check
      _
    $region10: #{a_call__.1} parent=5 // pred_check_branch
      %161 = sbr.rel (%p158) target = $region12
    $region11: #{a_call__.1} parent=5 // pred_region
      %s162 = ssub.s32 %s10, 1
      // Predicated region
      $region13: #{a_call__.1} parent=11 // pred_check
        %p163 = pneg %p43
      $region14: #{a_call__.1} parent=11 // pred_check_branch
        %165 = sbr.rel (%p163) target = $region16
      $region15: #{a_call__.1} parent=11 // pred_region
        _
      $region16: #{a_call__.1} parent=11 // pred_fallthru
        _
      // Predicated region
      $region17: #{a_call__.1} parent=11 // pred_check
        %p166 = pneg %p64
      $region18: #{a_call__.1} parent=11 // pred_check_branch
        %168 = sbr.rel (%p166) target = $region20
      $region19: #{a_call__.1} parent=11 // pred_region
        _
      $region20: #{a_call__.1} parent=11 // pred_fallthru
        _
    $region12: #{a_call__.1} parent=5 // pred_fallthru
      _
    %p169 = scmp.lt.s32.totalorder %s10, 2
    // Predicated region
    $region21: #{a_call__.1} parent=5 // pred_check
      %p170 = pneg %p169
    $region22: #{a_call__.1} parent=5 // pred_check_branch
      %172 = sbr.rel (%p170) target = $region24
    $region23: #{a_call__.1} parent=5 // pred_region
      // Predicated region
      $region25: #{a_call__.1} parent=23 // pred_check
        %p173 = pneg %p86
      $region26: #{a_call__.1} parent=23 // pred_check_branch
        %175 = sbr.rel (%p173) target = $region28
      $region27: #{a_call__.1} parent=23 // pred_region
        %s176 = smul.u32 2, %s18
        %p177 = scmp.lt.s32.totalorder %s17, 1
        %s178 = scalar_select %p177, %s17, 1
        %p179 = scmp.lt.s32.totalorder %s176, 1
        %s180 = scalar_select %p179, %s176, 1
        %s181 = smul.addr %s178, 10
        %s182 = sadd.s32 %s180, %s181
        %s183 = smul.addr %s182, 4
        %s184 = scalar_lea.vmem %s2, %s183
        %s185 = smul.u32 2, %s18
      $region28: #{a_call__.1} parent=23 // pred_fallthru
        _
      // Predicated region
      $region29: #{a_call__.1} parent=23 // pred_check
        %p186 = pneg %p114
      $region30: #{a_call__.1} parent=23 // pred_check_branch
        %188 = sbr.rel (%p186) target = $region32
      $region31: #{a_call__.1} parent=23 // pred_region
        %s189 = smul.u32 2, %s18
        %p190 = scmp.lt.s32.totalorder %s17, 1
        %s191 = scalar_select %p190, %s17, 1
        %p192 = scmp.lt.s32.totalorder %s189, 1
        %s193 = scalar_select %p192, %s189, 1
        %s194 = smul.addr %s191, 4
        %s195 = sadd.s32 %s193, %s194
        %s196 = smul.addr %s195, 8
        %s197 = scalar_lea.vmem %s3, %s196
        %s198 = smul.u32 2, %s18
      $region32: #{a_call__.1} parent=23 // pred_fallthru
        _
    $region24: #{a_call__.1} parent=5 // pred_fallthru
      _
    %p199 = scmp.le.s32.totalorder 1, %s10
    %p200 = scmp.lt.s32.totalorder %s10, 3
    %p201 = pnand %p199, %p200
    %p202 = pneg %p201
    // Predicated region
    $region33: #{a_call__.1} parent=5 // pred_check
      _
    $region34: #{a_call__.1} parent=5 // pred_check_branch
      %204 = sbr.rel (%p201) target = $region36
    $region35: #{a_call__.1} parent=5 // pred_region
      %s205 = ssub.s32 %s10, 1
      %p206 = pneg %p43
      %p207 = pneg %p40
      %p208 = pneg %p64
      %p209 = pneg %p61
      %s210 = smul.u32 2, %s20
      %p211 = scmp.lt.s32.totalorder %s19, 1
      %s212 = scalar_select %p211, %s19, 1
      %p213 = scmp.lt.s32.totalorder %s210, 1
      %s214 = scalar_select %p213, %s210, 1
      %s215 = smul.addr %s212, 10
      %s216 = sadd.s32 %s214, %s215
      %s217 = smul.addr %s216, 4
      %s218 = scalar_lea.vmem %s2, %s217
      %p219 = pneg %p92
      %p220 = pneg %p89
      %s221 = smul.u32 2, %s20
      %p222 = scmp.lt.s32.totalorder %s19, 1
      %s223 = scalar_select %p222, %s19, 1
      %p224 = scmp.lt.s32.totalorder %s221, 1
      %s225 = scalar_select %p224, %s221, 1
      %s226 = smul.addr %s223, 4
      %s227 = sadd.s32 %s225, %s226
      %s228 = smul.addr %s227, 8
      %s229 = scalar_lea.vmem %s3, %s228
      %p230 = pneg %p120
      %p231 = pneg %p117
      %p232 = pneg %p148
      %p233 = pneg %p145
      %s234 = smul.u32 2, %s20
      %p235 = scmp.lt.s32.totalorder %s19, 1
      %s236 = scalar_select %p235, %s19, 1
      %p237 = scmp.lt.s32.totalorder %s234, 1
      %s238 = scalar_select %p237, %s234, 1
      %s239 = smul.addr %s236, 2
      %s240 = sadd.s32 %s238, %s239
      %s241 = smul.addr %s240, 4
      %s242 = scalar_lea.vmem %s4, %s241
      %s243 = smul.u32 2, %s20
      %p244 = scmp.lt.s32.totalorder %s19, 1
      %s245 = scalar_select %p244, %s19, 1
      %p246 = scmp.lt.s32.totalorder %s243, 1
      %s247 = scalar_select %p246, %s243, 1
      %s248 = smul.addr %s245, 10
      %s249 = sadd.s32 %s247, %s248
      %s250 = smul.addr %s249, 4
      %s251 = scalar_lea.vmem %s2, %s250
      %s252 = smul.u32 2, %s20
      %s253 = smul.u32 2, %s20
      %p254 = scmp.lt.s32.totalorder %s19, 1
      %s255 = scalar_select %p254, %s19, 1
      %p256 = scmp.lt.s32.totalorder %s253, 1
      %s257 = scalar_select %p256, %s253, 1
      %s258 = smul.addr %s255, 4
      %s259 = sadd.s32 %s257, %s258
      %s260 = smul.addr %s259, 8
      %s261 = scalar_lea.vmem %s3, %s260
      %s262 = smul.u32 2, %s20
      %s263 = smul.u32 2, %s20
      %p264 = scmp.lt.s32.totalorder %s19, 1
      %s265 = scalar_select %p264, %s19, 1
      %p266 = scmp.lt.s32.totalorder %s263, 1
      %s267 = scalar_select %p266, %s263, 1
      %s268 = smul.addr %s265, 2
      %s269 = sadd.s32 %s267, %s268
      %s270 = smul.addr %s269, 4
      %s271 = scalar_lea.vmem %s4, %s270
      %s272 = smul.u32 2, %s20
      %v274 = vld [vmem:[%s261] sm:$0xff]
      %v275 = vld [vmem:[%s261 + $0x8] sm:$0xff]
      %v276 = vld [vmem:[%s261 + $0x10] sm:$0x1]
      %v277 = vld [vmem:[%s261 + $0x18] sm:$0x1]
      %v278 = vxor.u32 %v274, 2147483648
      %v279 = vxor.u32 %v275, 2147483648
      %v280 = vxor.u32 %v276, 2147483648
      %v281 = vxor.u32 %v277, 2147483648
      %v282 = vmul.f32 %v278, 1.442695
      %v283 = vpow.pop %v282
      %v284 = vmul.f32 %v279, 1.442695
      %v285 = vpow.pop %v284
      %v286 = vmul.f32 %v280, 1.442695
      %v287 = vpow.pop %v286
      %v288 = vmul.f32 %v281, 1.442695
      %v289 = vpow.pop %v288
      %v290 = vadd.f32 %v283, 1.0
      %v291 = vadd.f32 %v285, 1.0
      %v292 = vadd.f32 %v287, 1.0
      %v293 = vadd.f32 %v289, 1.0
      %v294 = vrcp.pop %v290
      %v295 = vmul.f32 1.0, %v294
      %v296 = vrcp.pop %v291
      %v297 = vmul.f32 1.0, %v296
      %v298 = vrcp.pop %v292
      %v299 = vmul.f32 1.0, %v298
      %v300 = vrcp.pop %v293
      %v301 = vmul.f32 1.0, %v300
      %v302 = vld [vmem:[%s1] sm:$0xff]
      %v303 = vld [vmem:[%s1 + $0x8] sm:$0xff]
      %v304 = vld [vmem:[%s1 + $0x10] sm:$0xff]
      %v305 = vld [vmem:[%s1 + $0x18] sm:$0xff]
      %v306 = vld [vmem:[%s1 + $0x20] sm:$0xf]
      %vm307 = vcmask 72704
      %v309 = vsel %vm307, %v302, 0
      %v312 = vsel %vm307, %v303, 0
      %v315 = vsel %vm307, %v304, 0
      %v318 = vsel %vm307, %v305, 0
      %v321 = vsel %vm307, %v306, 0
      %vm323 = vcmask 1040384
      %v325 = vsel %vm323, %v299, 0
      %v328 = vsel %vm323, %v301, 0
      %330 = vmatprep.subr.mxu0 %v297
      %331 = vmatpush1.msra.mxu0 %v295
      %332 = vmatprep.subr.mxu0 %v328
      %333 = vmatpush1.msra.mxu0 %v325
      %334 = vmatprep.subr.mxu0 0.0
      %335 = vmatpush1.msra.mxu0 0.0
      %336 = vmatprep.subr.mxu0 0.0
      %337 = vmatpush1.msra.mxu0 0.0
      %338 = vmatprep.subr.mxu0 0.0
      %339 = vmatpush1.msra.mxu0 0.0
      %340 = vmatprep.subr.mxu0 0.0
      %341 = vmatpush1.msra.mxu0 0.0
      %342 = vmatprep.subr.mxu0 0.0
      %343 = vmatpush1.msra.mxu0 0.0
      %344 = vmatprep.subr.mxu0 0.0
      %345 = vmatpush1.msra.mxu0 0.0
      %346 = vmatprep.subr.mxu0 0.0
      %347 = vmatpush1.msra.mxu0 0.0
      %348 = vmatprep.subr.mxu0 0.0
      %349 = vmatpush1.msra.mxu0 0.0
      %350 = vmatprep.subr.mxu0 0.0
      %351 = vmatpush1.msra.mxu0 0.0
      %352 = vmatprep.subr.mxu0 0.0
      %353 = vmatpush1.msra.mxu0 0.0
      %354 = vmatprep.subr.mxu0 0.0
      %355 = vmatpush1.msra.mxu0 0.0
      %356 = vmatprep.subr.mxu0 0.0
      %357 = vmatpush1.msra.mxu0 0.0
      %358 = vmatprep.subr.mxu0 0.0
      %359 = vmatpush1.msra.mxu0 0.0
      %360 = vmatprep.subr.mxu0 0.0
      %361 = vmatpush1.msra.mxu0 0.0
      %362 = vmatprep.subr.mxu0 0.0
      %363 = vmatpush1.msra.mxu0 0.0
      %364 = vmatprep.subr.mxu0 0.0
      %365 = vmatpush1.msra.mxu0 0.0
      %366 = vmatprep.subr.mxu0 0.0
      %367 = vmatpush1.msra.mxu0 0.0
      %368 = vmatprep.subr.mxu0 0.0
      %369 = vmatpush1.msra.mxu0 0.0
      %370 = vmatprep.subr.mxu0 0.0
      %371 = vmatpush1.msra.mxu0 0.0
      %372 = vmatprep.subr.mxu0 0.0
      %373 = vmatpush1.msra.mxu0 0.0
      %374 = vmatprep.subr.mxu0 0.0
      %375 = vmatpush1.msra.mxu0 0.0
      %376 = vmatprep.subr.mxu0 0.0
      %377 = vmatpush1.msra.mxu0 0.0
      %378 = vmatprep.subr.mxu0 0.0
      %379 = vmatpush1.msra.mxu0 0.0
      %380 = vmatprep.subr.mxu0 0.0
      %381 = vmatpush1.msra.mxu0 0.0
      %382 = vmatprep.subr.mxu0 0.0
      %383 = vmatpush1.msra.mxu0 0.0
      %384 = vmatprep.subr.mxu0 0.0
      %385 = vmatpush1.msra.mxu0 0.0
      %386 = vmatprep.subr.mxu0 0.0
      %387 = vmatpush1.msra.mxu0 0.0
      %388 = vmatprep.subr.mxu0 0.0
      %389 = vmatpush1.msra.mxu0 0.0
      %390 = vmatprep.subr.mxu0 0.0
      %391 = vmatpush1.msra.mxu0 0.0
      %392 = vmatprep.subr.mxu0 0.0
      %393 = vmatpush1.msra.mxu0 0.0
      %394 = vmatprep.mubr.f32.mxu0 0.0
      %395 = vmatmul.mubr.f32.gmra.mrb[0].mxu0 %v309
      %v396 = vpop.f32.mrb[0].mxu0
      %v397 = vadd.f32 0.0, %v396
      %v398 = vpop.f32.mrb[0].mxu0
      %v399 = vadd.f32 0.0, %v398
      %400 = vmatprep.mubr.f32.mxu0 0.0
      %401 = vmatmul.mubr.f32.gmra.mrb[0].mxu0 %v312
      %v402 = vpop.f32.mrb[0].mxu0
      %v403 = vadd.f32 0.0, %v402
      %v404 = vpop.f32.mrb[0].mxu0
      %v405 = vadd.f32 0.0, %v404
      %406 = vmatprep.mubr.f32.mxu0 0.0
      %407 = vmatmul.mubr.f32.gmra.mrb[0].mxu0 %v315
      %v408 = vpop.f32.mrb[0].mxu0
      %v409 = vadd.f32 0.0, %v408
      %v410 = vpop.f32.mrb[0].mxu0
      %v411 = vadd.f32 0.0, %v410
      %412 = vmatprep.mubr.f32.mxu0 0.0
      %413 = vmatmul.mubr.f32.gmra.mrb[0].mxu0 %v318
      %v414 = vpop.f32.mrb[0].mxu0
      %v415 = vadd.f32 0.0, %v414
      %v416 = vpop.f32.mrb[0].mxu0
      %v417 = vadd.f32 0.0, %v416
      %418 = vmatprep.mubr.f32.mxu0 0.0
      %419 = vmatmul.mubr.f32.gmra.mrb[0].mxu0 %v321
      %v420 = vpop.f32.mrb[0].mxu0
      %v421 = vadd.f32 0.0, %v420
      %v422 = vpop.f32.mrb[0].mxu0
      %v423 = vadd.f32 0.0, %v422
      %424 = vdwg.mxu0
      %v425 = vld [vmem:[%s251] sm:$0xff]
      %v426 = vld [vmem:[%s251 + $0x8] sm:$0xff]
      %v427 = vld [vmem:[%s251 + $0x10] sm:$0xff]
      %v428 = vld [vmem:[%s251 + $0x18] sm:$0xff]
      %v429 = vld [vmem:[%s251 + $0x20] sm:$0x33]
      %v430 = vpack.c.bf16 %v403, %v397
      %v431 = vpack.c.bf16 %v405, %v399
      %v432 = vpack.c.bf16 %v415, %v409
      %v433 = vpack.c.bf16 %v417, %v411
      %v434 = vpack.c.bf16 %v421, %v421
      %v435 = vpack.c.bf16 %v423, %v423
      %v442 = vunpack.c.l.b16 %v430
      %v443 = vunpack.c.l.b16 %v431
      %v444 = vunpack.c.h.b16 %v430
      %v445 = vunpack.c.h.b16 %v431
      %v446 = vunpack.c.l.b16 %v432
      %v447 = vunpack.c.l.b16 %v433
      %v448 = vunpack.c.h.b16 %v432
      %v449 = vunpack.c.h.b16 %v433
      %v450 = vunpack.c.l.b16 %v434
      %v451 = vunpack.c.l.b16 %v435
      %v452 = vpack.c.b16 %v443, %v442
      %v453 = vpack.c.b16 %v445, %v444
      %v454 = vpack.c.b16 %v447, %v446
      %v455 = vpack.c.b16 %v449, %v448
      %v456 = vpack.c.b16 %v451, %v450
      %v462 = vmul.bf16 %v425, %v452
      %v463 = vmul.bf16 %v426, %v453
      %v464 = vmul.bf16 %v427, %v454
      %v465 = vmul.bf16 %v428, %v455
      %v466 = vmul.bf16 %v429, %v456
      %v467 = vld [vmem:[%s0] sm:$0xf]
      %v473 = vunpack.c.l.b16 %v462
      %v474 = vunpack.c.h.b16 %v462
      %v475 = vunpack.c.l.b16 %v463
      %v476 = vunpack.c.h.b16 %v463
      %v477 = vunpack.c.l.b16 %v464
      %v478 = vunpack.c.h.b16 %v464
      %v479 = vunpack.c.l.b16 %v465
      %v480 = vunpack.c.h.b16 %v465
      %v481 = vunpack.c.l.b16 %v466
      %v482 = vunpack.c.h.b16 %v466
      %v483 = vpack.c.b16 %v475, %v473
      %v484 = vpack.c.b16 %v476, %v474
      %v485 = vpack.c.b16 %v479, %v477
      %v486 = vpack.c.b16 %v480, %v478
      %v487 = vpack.c.b16 %v481, %v481
      %v488 = vpack.c.b16 %v482, %v482
      %vm493 = vcmask 293888
      %v495 = vsel %vm493, %v467, 0
      %vm497 = vcmask 1041408
      %v499 = vsel %vm497, %v487, 0
      %v502 = vsel %vm497, %v488, 0
      %504 = vmatprep.subr.bf16.mxu0 %v484
      %505 = vmatpush1.bf16.msra.mxu0 %v483
      %506 = vmatprep.subr.bf16.mxu0 %v486
      %507 = vmatpush1.bf16.msra.mxu0 %v485
      %508 = vmatprep.subr.bf16.mxu0 %v502
      %509 = vmatpush1.bf16.msra.mxu0 %v499
      %510 = vmatprep.subr.bf16.mxu0 0
      %511 = vmatpush1.bf16.msra.mxu0 0
      %512 = vmatprep.subr.bf16.mxu0 0
      %513 = vmatpush1.bf16.msra.mxu0 0
      %514 = vmatprep.subr.bf16.mxu0 0
      %515 = vmatpush1.bf16.msra.mxu0 0
      %516 = vmatprep.subr.bf16.mxu0 0
      %517 = vmatpush1.bf16.msra.mxu0 0
      %518 = vmatprep.subr.bf16.mxu0 0
      %519 = vmatpush1.bf16.msra.mxu0 0
      %520 = vmatprep.subr.bf16.mxu0 0
      %521 = vmatpush1.bf16.msra.mxu0 0
      %522 = vmatprep.subr.bf16.mxu0 0
      %523 = vmatpush1.bf16.msra.mxu0 0
      %524 = vmatprep.subr.bf16.mxu0 0
      %525 = vmatpush1.bf16.msra.mxu0 0
      %526 = vmatprep.subr.bf16.mxu0 0
      %527 = vmatpush1.bf16.msra.mxu0 0
      %528 = vmatprep.subr.bf16.mxu0 0
      %529 = vmatpush1.bf16.msra.mxu0 0
      %530 = vmatprep.subr.bf16.mxu0 0
      %531 = vmatpush1.bf16.msra.mxu0 0
      %532 = vmatprep.subr.bf16.mxu0 0
      %533 = vmatpush1.bf16.msra.mxu0 0
      %534 = vmatprep.subr.bf16.mxu0 0
      %535 = vmatpush1.bf16.msra.mxu0 0
      %536 = vmatprep.mubr.bf16.mxu0 0
      %537 = vmatmul.mubr.bf16.gmra.mrb[0].mxu0 %v495
      %v538 = vpop.f32.mrb[0].mxu0
      %v539 = vadd.f32 0.0, %v538
      %v540 = vpop.f32.mrb[0].mxu0
      %v541 = vadd.f32 0.0, %v540
      %v542 = vpop.f32.mrb[0].mxu0
      %v543 = vpop.f32.mrb[0].mxu0
      %544 = vdwg.mxu0
      %v545 = vpack.c.bf16 %v539, %v539
      %v546 = vpack.c.bf16 %v541, %v541
      %v549 = vunpack.c.l.b16 %v545
      %v550 = vunpack.c.l.b16 %v546
      %v551 = vpack.c.b16 %v550, %v549
      %553 = vst [vmem:[%s271] sm:$0xff] %v551
      %s554 = smul.u32 2, %s20
      %p555 = scmp.lt.s32.totalorder %s19, 1
      %s556 = scalar_select %p555, %s19, 1
      %p557 = scmp.lt.s32.totalorder %s554, 1
      %s558 = scalar_select %p557, %s554, 1
      %s559 = smul.addr %s556, 2
      %s560 = sadd.s32 %s558, %s559
      %s561 = smul.addr %s560, 4
      %s562 = scalar_lea.vmem %s4, %s561
      // Predicated region
      $region37: #{a_call__.1} parent=35 // pred_check
        %p563 = pneg %p145
      $region38: #{a_call__.1} parent=35 // pred_check_branch
        %565 = sbr.rel (%p563) target = $region40
      $region39: #{a_call__.1} parent=35 // pred_region
        %s566 = smul.u32 2, %s20
      $region40: #{a_call__.1} parent=35 // pred_fallthru
        _
    $region36: #{a_call__.1} parent=5 // pred_fallthru
      _
    %p567 = scmp.le.s32.totalorder 2, %s10
    // Predicated region
    $region41: #{a_call__.1} parent=5 // pred_check
      %p568 = pneg %p567
    $region42: #{a_call__.1} parent=5 // pred_check_branch
      %570 = sbr.rel (%p568) target = $region44
    $region43: #{a_call__.1} parent=5 // pred_region
      %s571 = ssub.s32 %s10, 2
      // Predicated region
      $region45: #{a_call__.1} parent=43 // pred_check
        %p572 = pneg %p151
      $region46: #{a_call__.1} parent=43 // pred_check_branch
        %574 = sbr.rel (%p572) target = $region48
      $region47: #{a_call__.1} parent=43 // pred_region
        %s575 = smul.u32 2, %s22
        %p576 = scmp.lt.s32.totalorder %s21, 1
        %s577 = scalar_select %p576, %s21, 1
        %p578 = scmp.lt.s32.totalorder %s575, 1
        %s579 = scalar_select %p578, %s575, 1
        %s580 = smul.addr %s577, 2
        %s581 = sadd.s32 %s579, %s580
        %s582 = smul.addr %s581, 4
        %s583 = scalar_lea.vmem %s4, %s582
      $region48: #{a_call__.1} parent=43 // pred_fallthru
        _
    $region44: #{a_call__.1} parent=5 // pred_fallthru
      _
  $region6: #{a_call__.1} parent=0 // loop_footer
    %s14 = sadd.s32 1, %s10
  $region7: #{a_call__.1} parent=0 // loop_footer_branch
    %9 = sbr.rel target = $region3
  $region8: #{a_call__.1} parent=0 // loop_exit
    _

</llo_original>
